<compile_context>
chip_gen: v7x
topology: tpu7x:2x2x1
jax: 0.10.0
libtpu: 0.0.40
codegen_flags: <defaults>
</compile_context>

<pallas_src>
import functools

import jax
import jax.numpy as jnp
from jax import lax
from jax.experimental import pallas as pl
from jax.experimental.pallas import tpu as pltpu

NEG_INF = float("-inf")
GUMBEL_EPS = 1e-20
TINY = 1e-30


def _round_up(x, m):
    return ((x + m - 1) // m) * m


# ---------------------------------------------------------------------------
# Pallas kernel: masked log-space Sinkhorn on one (SC, N, M) chunk of samples
# that all belong to the same base batch element (shared nrows / ncols).
# ---------------------------------------------------------------------------
def _sinkhorn_kernel(nrows_ref, ncols_ref, s_ref, out_ref, *,
                     max_iter, tau, chunks_per_base):
    g = pl.program_id(0)
    b = g // chunks_per_base if chunks_per_base > 1 else g
    SC, N, M = s_ref.shape            # padded, lane/sublane aligned tile

    nr = nrows_ref[b]                 # valid rows for this base element (SMEM)
    nc = ncols_ref[b]                 # valid cols for this base element (SMEM)

    # Validity mask built ONCE per grid step at (1, N, M) (not per sample / per
    # iteration).  It is applied only to the input: -inf entries then propagate
    # through every normalization on their own (exp(-inf)=0, -inf - finite = -inf),
    # so no per-iteration selects are needed.
    row_ids = lax.broadcasted_iota(jnp.int32, (1, N, M), 1)
    col_ids = lax.broadcasted_iota(jnp.int32, (1, N, M), 2)
    valid = (row_ids < nr) & (col_ids < nc)

    inv_tau = jnp.float32(1.0 / tau)
    log_s = jnp.where(valid, s_ref[...] * inv_tau, jnp.float32(NEG_INF))

    if max_iter == 0:
        out_ref[...] = jnp.exp(log_s)
        return

    def half(ls, axis):
        m = jnp.max(ls, axis=axis, keepdims=True)
        m_safe = jnp.maximum(m, jnp.float32(-1e30))     # guard fully-masked lines
        ssum = jnp.sum(jnp.exp(ls - m_safe), axis=axis, keepdims=True)
        # TINY keeps fully-masked lines finite (no (-inf)-(-inf) NaN); for valid
        # lines ssum >= 1, so the guard is numerically invisible.
        return ls - (m_safe + jnp.log(ssum + jnp.float32(TINY)))

    # Iterations alternate axis=2 (even i) / axis=1 (odd i).  The LAST
    # half-normalization is peeled and fused with the exp() producing the output.
    n_rem = max_iter - 1
    n_pairs = n_rem // 2

    def pair_body(_, ls):
        ls = half(ls, 2)
        ls = half(ls, 1)
        return ls

    if n_pairs > 0:
        log_s = lax.fori_loop(0, n_pairs, pair_body, log_s,
                              unroll=True if n_pairs <= 8 else 2)
    if n_rem % 2 == 1:
        log_s = half(log_s, 2)

    last_axis = 1 if max_iter % 2 == 0 else 2
    m = jnp.max(log_s, axis=last_axis, keepdims=True)
    m_safe = jnp.maximum(m, jnp.float32(-1e30))
    e = jnp.exp(log_s - m_safe)                         # exactly 0 outside valid slice
    ssum = jnp.sum(e, axis=last_axis, keepdims=True)
    out_ref[...] = e * (jnp.float32(1.0) / (ssum + jnp.float32(TINY)))


def _choose_chunk(B, S, n_pad, m_pad, target_bytes):
    """Samples per grid step (a divisor of S): prefer whole-base chunks, but keep the
    per-step block under target_bytes and provide >= 2 grid steps (v7x has 2
    TensorCores) whenever there are >= 2 samples in total."""
    per_sample = n_pad * m_pad * 4
    best = 1
    for d in range(1, S + 1):
        if S % d:
            continue
        if d > 1 and d * per_sample > target_bytes:
            continue
        if B * S >= 2 and B * (S // d) < 2:
            continue
        best = d
    return best


def sinkhorn_pallas(s_rep, nrows, ncols, *, sample_num, max_iter, tau,
                    target_block_bytes=4 << 20):
    """Masked log-space Sinkhorn on (B*sample_num, N, M); sample k of base b is at
    index b*sample_num + k, and all samples of base b share nrows[b]/ncols[b]."""
    T, N, M = s_rep.shape
    S = int(sample_num)
    assert S >= 1 and T % S == 0
    B = T // S

    # Lane-dense layout: pad rows to a multiple of 8 (sublanes) and cols to a
    # multiple of 128 (lanes) so every vector op / store is full-width.
    n_pad = max(_round_up(N, 8), 8)
    m_pad = max(_round_up(M, 128), 128)
    if (n_pad, m_pad) != (N, M):
        s_rep = jnp.pad(s_rep, ((0, 0), (0, n_pad - N), (0, m_pad - M)))

    # Clamp like torch's slice(0, n) on an N-row tensor; also keeps the pad masked.
    nrows = jnp.minimum(jnp.asarray(nrows).astype(jnp.int32), N)
    ncols = jnp.minimum(jnp.asarray(ncols).astype(jnp.int32), M)

    SC = _choose_chunk(B, S, n_pad, m_pad, target_block_bytes)
    chunks_per_base = S // SC
    grid = (B * chunks_per_base,)

    block_bytes = SC * n_pad * m_pad * 4
    # Double-buffered in/out blocks + a handful of live full-tile temporaries,
    # headroomed well under v7x's 64 MiB per-TC VMEM (v5e/v6e have 128 MiB).
    vmem_bytes = int(min(48 << 20, max(8 << 20, 12 * block_bytes)))

    cost = pl.CostEstimate(
        flops=int(6 * T * n_pad * m_pad * max(max_iter, 1)),
        transcendentals=int(T * n_pad * m_pad * (max_iter + 1)),
        bytes_accessed=int(2 * T * n_pad * m_pad * 4),
    )

    kernel = functools.partial(_sinkhorn_kernel, max_iter=int(max_iter),
                               tau=float(tau), chunks_per_base=int(chunks_per_base))

    out = pl.pallas_call(
        kernel,
        out_shape=jax.ShapeDtypeStruct((T, n_pad, m_pad), jnp.float32),
        grid_spec=pltpu.PrefetchScalarGridSpec(
            num_scalar_prefetch=2,                       # nrows, ncols (SMEM)
            grid=grid,
            in_specs=[pl.BlockSpec((SC, n_pad, m_pad),
                                   lambda g, nr, nc: (g, 0, 0))],
            out_specs=pl.BlockSpec((SC, n_pad, m_pad),
                                   lambda g, nr, nc: (g, 0, 0)),
        ),
        compiler_params=pltpu.CompilerParams(
            dimension_semantics=("parallel",),
            vmem_limit_bytes=vmem_bytes),
        cost_estimate=cost,
    )(nrows, ncols, s_rep.astype(jnp.float32))

    if (n_pad, m_pad) != (N, M):
        out = out[:, :N, :M]
    return out


# ---------------------------------------------------------------------------
# GumbelSinkhorn.forward equivalent (log_forward, batched_operation=False).
# ---------------------------------------------------------------------------
def gumbel_sinkhorn(s, nrows=None, ncols=None, key=None, *, sample_num=5,
                    max_iter=10, tau=1.0, add_noise=True,
                    target_block_bytes=4 << 20):
    # TODO(synk): dummy_row=True path of Sinkhorn.forward_log is not implemented.
    # TODO(synk): torch's degenerate 2-D-input repeat_interleave-over-rows behavior
    #             is not replicated; 2-D input is treated as a batch of one.
    matrix_input = s.ndim == 2
    if matrix_input:
        s = s[None]
    B = s.shape[0]

    # Sinkhorn.forward_log transpose handling: ensure cols >= rows.  The reference
    # does NOT swap nrows/ncols when it transposes, so neither do we.
    transposed = s.shape[2] < s.shape[1]
    if transposed:
        s = jnp.swapaxes(s, 1, 2)

    if nrows is None:
        nrows = jnp.full((B,), s.shape[1], dtype=jnp.int32)
    if ncols is None:
        ncols = jnp.full((B,), s.shape[2], dtype=jnp.int32)

    # torch.repeat_interleave(s, sample_num, dim=0) + sample_gumbel(s_rep), done in
    # plain JAX (the on-chip TPU PRNG has no CPU/interpret lowering).
    s_rep = jnp.repeat(s.astype(jnp.float32), sample_num, axis=0)
    if add_noise:
        if key is None:
            key = jax.random.PRNGKey(0)
        u = jax.random.uniform(key, s_rep.shape, dtype=jnp.float32)
        gumbel = -jnp.log(-jnp.log(u + GUMBEL_EPS) + GUMBEL_EPS)
        s_rep = s_rep + gumbel

    out = sinkhorn_pallas(s_rep, nrows, ncols, sample_num=sample_num,
                          max_iter=max_iter, tau=tau,
                          target_block_bytes=target_block_bytes)

    if transposed:
        out = jnp.swapaxes(out, 1, 2)
    return out


# ---------------------------------------------------------------------------
# Pure-JAX reference of Sinkhorn.forward_log (per-batch loop, dummy_row=False).
# ---------------------------------------------------------------------------
def _sinkhorn_forward_log_ref(s, nrows, ncols, *, max_iter, tau):
    B = s.shape[0]
    transposed = s.shape[2] < s.shape[1]
    if transposed:
        s = jnp.swapaxes(s, 1, 2)
    N, M = s.shape[1], s.shape[2]
    s = s / tau
    outs = []
    for b in range(B):
        nr = min(int(nrows[b]), N)
        nc = min(int(ncols[b]), M)
        log_s = s[b, :nr, :nc]
        for i in range(max_iter):
            axis = 1 if i % 2 == 0 else 0
            log_s = log_s - jax.scipy.special.logsumexp(log_s, axis=axis, keepdims=True)
        full = jnp.full((N, M), NEG_INF, dtype=jnp.float32).at[:nr, :nc].set(log_s)
        outs.append(full)
    out = jnp.exp(jnp.stack(outs))
    if transposed:
        out = jnp.swapaxes(out, 1, 2)
    return out


if __name__ == "__main__":
    key = jax.random.PRNGKey(0)
    k1, k2, kg1, kg2 = jax.random.split(key, 4)

    sample_num, max_iter, tau = 5, 10, 1.0        # GumbelSinkhorn defaults

    # ---- Case 1: cols >= rows (no internal transpose), per-batch valid sizes.
    B, N, M = 2, 8, 10
    s1 = jax.random.normal(k1, (B, N, M), dtype=jnp.float32)
    nrows1 = jnp.array([8, 6], dtype=jnp.int32)
    ncols1 = jnp.array([10, 7], dtype=jnp.int32)

    det = jax.block_until_ready(
        gumbel_sinkhorn(s1, nrows1, ncols1, kg1, sample_num=sample_num,
                        max_iter=max_iter, tau=tau, add_noise=False))
    assert det.shape == (B * sample_num, N, M)
    ref = _sinkhorn_forward_log_ref(s1, nrows1, ncols1, max_iter=max_iter, tau=tau)
    want = jnp.repeat(ref, sample_num, axis=0)
    assert jnp.allclose(det, want, rtol=1e-5, atol=1e-5), "noise-free mismatch (case 1)"

    # ---- Case 2: rows > cols exercises the internal transpose path.
    B2, N2, M2 = 2, 12, 8
    s2 = jax.random.normal(k2, (B2, N2, M2), dtype=jnp.float32)
    nrows2 = jnp.array([12, 9], dtype=jnp.int32)
    ncols2 = jnp.array([8, 6], dtype=jnp.int32)
    det2 = jax.block_until_ready(
        gumbel_sinkhorn(s2, nrows2, ncols2, kg1, sample_num=sample_num,
                        max_iter=max_iter, tau=tau, add_noise=False))
    ref2 = _sinkhorn_forward_log_ref(s2, nrows2, ncols2, max_iter=max_iter, tau=tau)
    assert jnp.allclose(det2, jnp.repeat(ref2, sample_num, axis=0),
                        rtol=1e-5, atol=1e-5), "noise-free mismatch (case 2, transposed)"

    # ---- Full forward with Gumbel noise: structural / stochastic checks.
    out = jax.block_until_ready(
        gumbel_sinkhorn(s1, nrows1, ncols1, kg2, sample_num=sample_num,
                        max_iter=max_iter, tau=tau, add_noise=True))
    assert out.shape == (B * sample_num, N, M)
    assert bool(jnp.all(jnp.isfinite(out))), "non-finite output"
    row_ids = jnp.arange(N)[:, None]
    col_ids = jnp.arange(M)[None, :]
    for r in range(B * sample_num):
        b = r // sample_num
        nr, nc = int(nrows1[b]), int(ncols1[b])
        valid = (row_ids < nr) & (col_ids < nc)
        assert bool(jnp.all(jnp.where(valid, 0.0, out[r]) == 0.0)), \
            "nonzero outside valid region"
        # max_iter=10 ends on a column normalization -> valid columns sum to 1.
        col_sums = out[r].sum(axis=0)
        assert bool(jnp.allclose(col_sums[:nc], 1.0, atol=1e-4)), \
            "columns not normalized"
    assert not bool(jnp.allclose(out[0], out[1])), "samples identical: noise missing"

    print("KERNEL_OK")
</pallas_src>

<mosaic_0001>
module attributes {stable_mosaic.version = 11 : i64} {
  func.func @_sinkhorn_kernel(%arg0: i32, %arg1: memref<2xi32, #tpu.memory_space<smem>>, %arg2: memref<2xi32, #tpu.memory_space<smem>>, %arg3: memref<5x8x128xf32, #tpu.memory_space<vmem>>, %arg4: memref<5x8x128xf32, #tpu.memory_space<vmem>>) attributes {dimension_semantics = [#tpu.dimension_semantics<parallel>], iteration_bounds = array<i64: 2>, scalar_prefetch = 2 : i64, scratch_operands = 0 : i64, tpu.core_type = #tpu.core_type<tc>, window_params = [{transform_indices = @transform_0, window_bounds = array<i64: 5, 8, 128>}, {transform_indices = @transform_1, window_bounds = array<i64: 5, 8, 128>}]} {
    %0 = arith.index_cast %arg0 : i32 to index
    %1 = memref.load %arg1[%0] : memref<2xi32, #tpu.memory_space<smem>>
    %2 = arith.index_cast %arg0 : i32 to index
    %3 = memref.load %arg2[%2] : memref<2xi32, #tpu.memory_space<smem>>
    %4 = tpu.iota {dimensions = array<i32: 1>} : vector<1x8x128xi32>
    %5 = tpu.iota {dimensions = array<i32: 2>} : vector<1x8x128xi32>
    %6 = vector.broadcast %1 : i32 to vector<1x8x128xi32>
    %7 = arith.cmpi slt, %4, %6 : vector<1x8x128xi32>
    %8 = vector.broadcast %3 : i32 to vector<1x8x128xi32>
    %9 = arith.cmpi slt, %5, %8 : vector<1x8x128xi32>
    %10 = arith.andi %7, %9 : vector<1x8x128xi1>
    %c0 = arith.constant 0 : index
    %c0_0 = arith.constant 0 : index
    %c0_1 = arith.constant 0 : index
    %11 = vector.load %arg3[%c0, %c0_0, %c0_1] : memref<5x8x128xf32, #tpu.memory_space<vmem>>, vector<5x8x128xf32>
    %cst = arith.constant 1.000000e+00 : f32
    %12 = vector.broadcast %cst : f32 to vector<5x8x128xf32>
    %13 = arith.mulf %11, %12 : vector<5x8x128xf32>
    %cst_2 = arith.constant 0xFF800000 : f32
    %14 = vector.shape_cast %10 : vector<1x8x128xi1> to vector<1x8x128xi1>
    %15 = vector.broadcast %14 : vector<1x8x128xi1> to vector<5x8x128xi1>
    %16 = vector.broadcast %cst_2 : f32 to vector<5x8x128xf32>
    %17 = arith.select %15, %13, %16 : vector<5x8x128xi1>, vector<5x8x128xf32>
    %c0_i32 = arith.constant 0 : i32
    %cst_3 = arith.constant dense<0xFF800000> : vector<5x8xf32>
    %18 = vector.multi_reduction <maximumf>, %17, %cst_3 [2] : vector<5x8x128xf32> to vector<5x8xf32>
    %19 = vector.shape_cast %18 : vector<5x8xf32> to vector<5x8x1xf32>
    %cst_4 = arith.constant -1.000000e+30 : f32
    %20 = vector.broadcast %cst_4 : f32 to vector<5x8x1xf32>
    %21 = arith.maximumf %19, %20 : vector<5x8x1xf32>
    %22 = vector.broadcast %21 : vector<5x8x1xf32> to vector<5x8x128xf32>
    %23 = arith.subf %17, %22 : vector<5x8x128xf32>
    %24 = math.exp %23 : vector<5x8x128xf32>
    %cst_5 = arith.constant dense<0.000000e+00> : vector<5x8xf32>
    %25 = vector.multi_reduction <add>, %24, %cst_5 [2] : vector<5x8x128xf32> to vector<5x8xf32>
    %26 = vector.shape_cast %25 : vector<5x8xf32> to vector<5x8x1xf32>
    %cst_6 = arith.constant 1.000000e-30 : f32
    %27 = vector.broadcast %cst_6 : f32 to vector<5x8x1xf32>
    %28 = arith.addf %26, %27 : vector<5x8x1xf32>
    %29 = math.log %28 : vector<5x8x1xf32>
    %30 = arith.addf %21, %29 : vector<5x8x1xf32>
    %31 = vector.broadcast %30 : vector<5x8x1xf32> to vector<5x8x128xf32>
    %32 = arith.subf %17, %31 : vector<5x8x128xf32>
    %cst_7 = arith.constant dense<0xFF800000> : vector<5x128xf32>
    %33 = vector.multi_reduction <maximumf>, %32, %cst_7 [1] : vector<5x8x128xf32> to vector<5x128xf32>
    %34 = vector.shape_cast %33 : vector<5x128xf32> to vector<5x1x128xf32>
    %cst_8 = arith.constant -1.000000e+30 : f32
    %35 = vector.broadcast %cst_8 : f32 to vector<5x1x128xf32>
    %36 = arith.maximumf %34, %35 : vector<5x1x128xf32>
    %37 = vector.broadcast %36 : vector<5x1x128xf32> to vector<5x8x128xf32>
    %38 = arith.subf %32, %37 : vector<5x8x128xf32>
    %39 = math.exp %38 : vector<5x8x128xf32>
    %cst_9 = arith.constant dense<0.000000e+00> : vector<5x128xf32>
    %40 = vector.multi_reduction <add>, %39, %cst_9 [1] : vector<5x8x128xf32> to vector<5x128xf32>
    %41 = vector.shape_cast %40 : vector<5x128xf32> to vector<5x1x128xf32>
    %cst_10 = arith.constant 1.000000e-30 : f32
    %42 = vector.broadcast %cst_10 : f32 to vector<5x1x128xf32>
    %43 = arith.addf %41, %42 : vector<5x1x128xf32>
    %44 = math.log %43 : vector<5x1x128xf32>
    %45 = arith.addf %36, %44 : vector<5x1x128xf32>
    %46 = vector.broadcast %45 : vector<5x1x128xf32> to vector<5x8x128xf32>
    %47 = arith.subf %32, %46 : vector<5x8x128xf32>
    %c1_i32 = arith.constant 1 : i32
    %cst_11 = arith.constant dense<0xFF800000> : vector<5x8xf32>
    %48 = vector.multi_reduction <maximumf>, %47, %cst_11 [2] : vector<5x8x128xf32> to vector<5x8xf32>
    %49 = vector.shape_cast %48 : vector<5x8xf32> to vector<5x8x1xf32>
    %cst_12 = arith.constant -1.000000e+30 : f32
    %50 = vector.broadcast %cst_12 : f32 to vector<5x8x1xf32>
    %51 = arith.maximumf %49, %50 : vector<5x8x1xf32>
    %52 = vector.broadcast %51 : vector<5x8x1xf32> to vector<5x8x128xf32>
    %53 = arith.subf %47, %52 : vector<5x8x128xf32>
    %54 = math.exp %53 : vector<5x8x128xf32>
    %cst_13 = arith.constant dense<0.000000e+00> : vector<5x8xf32>
    %55 = vector.multi_reduction <add>, %54, %cst_13 [2] : vector<5x8x128xf32> to vector<5x8xf32>
    %56 = vector.shape_cast %55 : vector<5x8xf32> to vector<5x8x1xf32>
    %cst_14 = arith.constant 1.000000e-30 : f32
    %57 = vector.broadcast %cst_14 : f32 to vector<5x8x1xf32>
    %58 = arith.addf %56, %57 : vector<5x8x1xf32>
    %59 = math.log %58 : vector<5x8x1xf32>
    %60 = arith.addf %51, %59 : vector<5x8x1xf32>
    %61 = vector.broadcast %60 : vector<5x8x1xf32> to vector<5x8x128xf32>
    %62 = arith.subf %47, %61 : vector<5x8x128xf32>
    %cst_15 = arith.constant dense<0xFF800000> : vector<5x128xf32>
    %63 = vector.multi_reduction <maximumf>, %62, %cst_15 [1] : vector<5x8x128xf32> to vector<5x128xf32>
    %64 = vector.shape_cast %63 : vector<5x128xf32> to vector<5x1x128xf32>
    %cst_16 = arith.constant -1.000000e+30 : f32
    %65 = vector.broadcast %cst_16 : f32 to vector<5x1x128xf32>
    %66 = arith.maximumf %64, %65 : vector<5x1x128xf32>
    %67 = vector.broadcast %66 : vector<5x1x128xf32> to vector<5x8x128xf32>
    %68 = arith.subf %62, %67 : vector<5x8x128xf32>
    %69 = math.exp %68 : vector<5x8x128xf32>
    %cst_17 = arith.constant dense<0.000000e+00> : vector<5x128xf32>
    %70 = vector.multi_reduction <add>, %69, %cst_17 [1] : vector<5x8x128xf32> to vector<5x128xf32>
    %71 = vector.shape_cast %70 : vector<5x128xf32> to vector<5x1x128xf32>
    %cst_18 = arith.constant 1.000000e-30 : f32
    %72 = vector.broadcast %cst_18 : f32 to vector<5x1x128xf32>
    %73 = arith.addf %71, %72 : vector<5x1x128xf32>
    %74 = math.log %73 : vector<5x1x128xf32>
    %75 = arith.addf %66, %74 : vector<5x1x128xf32>
    %76 = vector.broadcast %75 : vector<5x1x128xf32> to vector<5x8x128xf32>
    %77 = arith.subf %62, %76 : vector<5x8x128xf32>
    %c2_i32 = arith.constant 2 : i32
    %cst_19 = arith.constant dense<0xFF800000> : vector<5x8xf32>
    %78 = vector.multi_reduction <maximumf>, %77, %cst_19 [2] : vector<5x8x128xf32> to vector<5x8xf32>
    %79 = vector.shape_cast %78 : vector<5x8xf32> to vector<5x8x1xf32>
    %cst_20 = arith.constant -1.000000e+30 : f32
    %80 = vector.broadcast %cst_20 : f32 to vector<5x8x1xf32>
    %81 = arith.maximumf %79, %80 : vector<5x8x1xf32>
    %82 = vector.broadcast %81 : vector<5x8x1xf32> to vector<5x8x128xf32>
    %83 = arith.subf %77, %82 : vector<5x8x128xf32>
    %84 = math.exp %83 : vector<5x8x128xf32>
    %cst_21 = arith.constant dense<0.000000e+00> : vector<5x8xf32>
    %85 = vector.multi_reduction <add>, %84, %cst_21 [2] : vector<5x8x128xf32> to vector<5x8xf32>
    %86 = vector.shape_cast %85 : vector<5x8xf32> to vector<5x8x1xf32>
    %cst_22 = arith.constant 1.000000e-30 : f32
    %87 = vector.broadcast %cst_22 : f32 to vector<5x8x1xf32>
    %88 = arith.addf %86, %87 : vector<5x8x1xf32>
    %89 = math.log %88 : vector<5x8x1xf32>
    %90 = arith.addf %81, %89 : vector<5x8x1xf32>
    %91 = vector.broadcast %90 : vector<5x8x1xf32> to vector<5x8x128xf32>
    %92 = arith.subf %77, %91 : vector<5x8x128xf32>
    %cst_23 = arith.constant dense<0xFF800000> : vector<5x128xf32>
    %93 = vector.multi_reduction <maximumf>, %92, %cst_23 [1] : vector<5x8x128xf32> to vector<5x128xf32>
    %94 = vector.shape_cast %93 : vector<5x128xf32> to vector<5x1x128xf32>
    %cst_24 = arith.constant -1.000000e+30 : f32
    %95 = vector.broadcast %cst_24 : f32 to vector<5x1x128xf32>
    %96 = arith.maximumf %94, %95 : vector<5x1x128xf32>
    %97 = vector.broadcast %96 : vector<5x1x128xf32> to vector<5x8x128xf32>
    %98 = arith.subf %92, %97 : vector<5x8x128xf32>
    %99 = math.exp %98 : vector<5x8x128xf32>
    %cst_25 = arith.constant dense<0.000000e+00> : vector<5x128xf32>
    %100 = vector.multi_reduction <add>, %99, %cst_25 [1] : vector<5x8x128xf32> to vector<5x128xf32>
    %101 = vector.shape_cast %100 : vector<5x128xf32> to vector<5x1x128xf32>
    %cst_26 = arith.constant 1.000000e-30 : f32
    %102 = vector.broadcast %cst_26 : f32 to vector<5x1x128xf32>
    %103 = arith.addf %101, %102 : vector<5x1x128xf32>
    %104 = math.log %103 : vector<5x1x128xf32>
    %105 = arith.addf %96, %104 : vector<5x1x128xf32>
    %106 = vector.broadcast %105 : vector<5x1x128xf32> to vector<5x8x128xf32>
    %107 = arith.subf %92, %106 : vector<5x8x128xf32>
    %c3_i32 = arith.constant 3 : i32
    %cst_27 = arith.constant dense<0xFF800000> : vector<5x8xf32>
    %108 = vector.multi_reduction <maximumf>, %107, %cst_27 [2] : vector<5x8x128xf32> to vector<5x8xf32>
    %109 = vector.shape_cast %108 : vector<5x8xf32> to vector<5x8x1xf32>
    %cst_28 = arith.constant -1.000000e+30 : f32
    %110 = vector.broadcast %cst_28 : f32 to vector<5x8x1xf32>
    %111 = arith.maximumf %109, %110 : vector<5x8x1xf32>
    %112 = vector.broadcast %111 : vector<5x8x1xf32> to vector<5x8x128xf32>
    %113 = arith.subf %107, %112 : vector<5x8x128xf32>
    %114 = math.exp %113 : vector<5x8x128xf32>
    %cst_29 = arith.constant dense<0.000000e+00> : vector<5x8xf32>
    %115 = vector.multi_reduction <add>, %114, %cst_29 [2] : vector<5x8x128xf32> to vector<5x8xf32>
    %116 = vector.shape_cast %115 : vector<5x8xf32> to vector<5x8x1xf32>
    %cst_30 = arith.constant 1.000000e-30 : f32
    %117 = vector.broadcast %cst_30 : f32 to vector<5x8x1xf32>
    %118 = arith.addf %116, %117 : vector<5x8x1xf32>
    %119 = math.log %118 : vector<5x8x1xf32>
    %120 = arith.addf %111, %119 : vector<5x8x1xf32>
    %121 = vector.broadcast %120 : vector<5x8x1xf32> to vector<5x8x128xf32>
    %122 = arith.subf %107, %121 : vector<5x8x128xf32>
    %cst_31 = arith.constant dense<0xFF800000> : vector<5x128xf32>
    %123 = vector.multi_reduction <maximumf>, %122, %cst_31 [1] : vector<5x8x128xf32> to vector<5x128xf32>
    %124 = vector.shape_cast %123 : vector<5x128xf32> to vector<5x1x128xf32>
    %cst_32 = arith.constant -1.000000e+30 : f32
    %125 = vector.broadcast %cst_32 : f32 to vector<5x1x128xf32>
    %126 = arith.maximumf %124, %125 : vector<5x1x128xf32>
    %127 = vector.broadcast %126 : vector<5x1x128xf32> to vector<5x8x128xf32>
    %128 = arith.subf %122, %127 : vector<5x8x128xf32>
    %129 = math.exp %128 : vector<5x8x128xf32>
    %cst_33 = arith.constant dense<0.000000e+00> : vector<5x128xf32>
    %130 = vector.multi_reduction <add>, %129, %cst_33 [1] : vector<5x8x128xf32> to vector<5x128xf32>
    %131 = vector.shape_cast %130 : vector<5x128xf32> to vector<5x1x128xf32>
    %cst_34 = arith.constant 1.000000e-30 : f32
    %132 = vector.broadcast %cst_34 : f32 to vector<5x1x128xf32>
    %133 = arith.addf %131, %132 : vector<5x1x128xf32>
    %134 = math.log %133 : vector<5x1x128xf32>
    %135 = arith.addf %126, %134 : vector<5x1x128xf32>
    %136 = vector.broadcast %135 : vector<5x1x128xf32> to vector<5x8x128xf32>
    %137 = arith.subf %122, %136 : vector<5x8x128xf32>
    %cst_35 = arith.constant dense<0xFF800000> : vector<5x8xf32>
    %138 = vector.multi_reduction <maximumf>, %137, %cst_35 [2] : vector<5x8x128xf32> to vector<5x8xf32>
    %139 = vector.shape_cast %138 : vector<5x8xf32> to vector<5x8x1xf32>
    %cst_36 = arith.constant -1.000000e+30 : f32
    %140 = vector.broadcast %cst_36 : f32 to vector<5x8x1xf32>
    %141 = arith.maximumf %139, %140 : vector<5x8x1xf32>
    %142 = vector.broadcast %141 : vector<5x8x1xf32> to vector<5x8x128xf32>
    %143 = arith.subf %137, %142 : vector<5x8x128xf32>
    %144 = math.exp %143 : vector<5x8x128xf32>
    %cst_37 = arith.constant dense<0.000000e+00> : vector<5x8xf32>
    %145 = vector.multi_reduction <add>, %144, %cst_37 [2] : vector<5x8x128xf32> to vector<5x8xf32>
    %146 = vector.shape_cast %145 : vector<5x8xf32> to vector<5x8x1xf32>
    %cst_38 = arith.constant 1.000000e-30 : f32
    %147 = vector.broadcast %cst_38 : f32 to vector<5x8x1xf32>
    %148 = arith.addf %146, %147 : vector<5x8x1xf32>
    %149 = math.log %148 : vector<5x8x1xf32>
    %150 = arith.addf %141, %149 : vector<5x8x1xf32>
    %151 = vector.broadcast %150 : vector<5x8x1xf32> to vector<5x8x128xf32>
    %152 = arith.subf %137, %151 : vector<5x8x128xf32>
    %cst_39 = arith.constant dense<0xFF800000> : vector<5x128xf32>
    %153 = vector.multi_reduction <maximumf>, %152, %cst_39 [1] : vector<5x8x128xf32> to vector<5x128xf32>
    %154 = vector.shape_cast %153 : vector<5x128xf32> to vector<5x1x128xf32>
    %cst_40 = arith.constant -1.000000e+30 : f32
    %155 = vector.broadcast %cst_40 : f32 to vector<5x1x128xf32>
    %156 = arith.maximumf %154, %155 : vector<5x1x128xf32>
    %157 = vector.broadcast %156 : vector<5x1x128xf32> to vector<5x8x128xf32>
    %158 = arith.subf %152, %157 : vector<5x8x128xf32>
    %159 = math.exp %158 : vector<5x8x128xf32>
    %cst_41 = arith.constant dense<0.000000e+00> : vector<5x128xf32>
    %160 = vector.multi_reduction <add>, %159, %cst_41 [1] : vector<5x8x128xf32> to vector<5x128xf32>
    %161 = vector.shape_cast %160 : vector<5x128xf32> to vector<5x1x128xf32>
    %cst_42 = arith.constant 1.000000e-30 : f32
    %162 = vector.broadcast %cst_42 : f32 to vector<5x1x128xf32>
    %163 = arith.addf %161, %162 : vector<5x1x128xf32>
    %cst_43 = arith.constant 1.000000e+00 : f32
    %164 = vector.broadcast %cst_43 : f32 to vector<5x1x128xf32>
    %165 = arith.divf %164, %163 : vector<5x1x128xf32>
    %166 = vector.broadcast %165 : vector<5x1x128xf32> to vector<5x8x128xf32>
    %167 = arith.mulf %159, %166 : vector<5x8x128xf32>
    %c0_44 = arith.constant 0 : index
    %c0_45 = arith.constant 0 : index
    %c0_46 = arith.constant 0 : index
    %168 = vector.load %arg4[%c0_44, %c0_45, %c0_46] : memref<5x8x128xf32, #tpu.memory_space<vmem>>, vector<5x8x128xf32>
    tpu.vector_store %arg4[%c0_44, %c0_45, %c0_46], %167 {strides = array<i32>} : memref<5x8x128xf32, #tpu.memory_space<vmem>>, vector<5x8x128xf32>,
    return
  }
  func.func @transform_0(%arg0: i32, %arg1: memref<2xi32, #tpu.memory_space<smem>>, %arg2: memref<2xi32, #tpu.memory_space<smem>>) -> (i32, i32, i32) {
    %c0_i32 = arith.constant 0 : i32
    %c0_i32_0 = arith.constant 0 : i32
    %c0_i32_1 = arith.constant 0 : i32
    return %arg0, %c0_i32, %c0_i32_0 : i32, i32, i32
  }
  func.func @transform_1(%arg0: i32, %arg1: memref<2xi32, #tpu.memory_space<smem>>, %arg2: memref<2xi32, #tpu.memory_space<smem>>) -> (i32, i32, i32) {
    %c0_i32 = arith.constant 0 : i32
    %c0_i32_0 = arith.constant 0 : i32
    %c0_i32_1 = arith.constant 0 : i32
    return %arg0, %c0_i32, %c0_i32_0 : i32, i32, i32
  }
}

</mosaic_0001>

<llo_original>
// kernel: tpu_custom_call.1
$region0: #{tpu_custom_call.1}
  #allocation0 [shape = 'u32[]', space=smem, size = 0x4, offset = 0x4, fixed_abs, tag = 'smem constant byte address 0x4 - core index']
  #allocation1 [shape = 'u32[144,128]{1,0:T(1,128)}', space=vmem, size = 0x12000, scoped, tag = 'internal scratch']
  #allocation2 [shape = 's32[1]{0}', space=sflag, size = 0x4, scoped, tag = 'scoped memory for tpu_custom_call.1']
  #allocation3 [shape = 'u8[512]{0}', space=smem, size = 0x200, scoped, tag = 'prefetched SMEM operand 0']
  #allocation4 [shape = 'u8[512]{0}', space=smem, size = 0x200, scoped, tag = 'prefetched SMEM operand 1']
  %s0 = inlined_call_operand.hbm [shape: s32[2], index: 0, kind: input, shape index: {}]
  %s1 = inlined_call_operand.vmem [shape: s32[2], index: 1, kind: input, shape index: {}]
  %s2 = inlined_call_operand.hbm [shape: f32[10,8,128], index: 2, kind: input, shape index: {}]
  %s3 = inlined_call_operand.hbm [shape: f32[10,8,128], index: 3, kind: output, shape index: {}]
  %s4 = sld [smem:[#allocation0]]
  $region41: #{tpu_custom_call.1} parent=0
    _
  %s6 = ssub.s32 1, %s4
  %s7 = scalar_select 0, %s6, %s4
  %9 = dma.hbm_to_smem %s0, 16, [#allocation3], [#allocation2]
  %s10 = sshll.u32 %s1, 4
  %s11 = int_to_ptr.vmem [resolvable:$true] %s10
  %13 = dma.vmem_to_smem %s11, 16, [#allocation4], [#allocation2]
  %14 = dma.done [#allocation2], 32
  %15 = sfence
  $region1: #{tpu_custom_call.1} parent=0
    #allocation5 [shape = 'u8[40960]{0}', space=vmem, size = 0xa000, scoped, tag = 'input window, operand 2']
    #allocation6 [shape = 's32[2]{0}', space=sflag, size = 0x8, scoped, tag = 'scoped memory for tpu_custom_call.1']
    #allocation7 [shape = 's32[2]{0}', space=sflag, size = 0x8, scoped, tag = 'scoped memory for tpu_custom_call.1']
    #allocation8 [shape = 'u8[40960]{0}', space=vmem, size = 0xa000, scoped, tag = 'output window, operand 0']
    %16 = vsyncpa [#allocation6], 0
    %s17 = scalar_lea.sflag [#allocation6], 1
    %18 = vsyncpa %s17, 0
    %19 = vsyncpa [#allocation7], 0
    %s20 = scalar_lea.sflag [#allocation7], 1
    %21 = vsyncpa %s20, 0
    loop: start=0, step=1, limit=4
    $region2: #{tpu_custom_call.1} parent=1 // loop_pre_header
      _
    $region3: #{tpu_custom_call.1} parent=1 // loop_header
      %s23 = sphi 0, %s27
      %p24 = scmp.ge.s32.totalorder %s23, 4
      %s33 = sphi 0, %s35
      %s36 = sphi 0, %s33
      %s37 = sphi 0, %s36
      %s53 = sphi 0, %s37
      %s59 = sphi 0, %s61
      %s62 = sphi 0, %s59
      %s63 = sphi 0, %s62
      %s79 = sphi 0, %s63
    $region4: #{tpu_custom_call.1} parent=1 // loop_header_branch
      %26 = sbr.rel (%p24) target = $region8
    $region5: #{tpu_custom_call.1} parent=1 // loop_body
      %s28 = ssub.s32 %s23, 1
      %s29 = ssub.s32 %s23, 2
      %s30 = sadd.s32 %s23, 1
      %s31 = ssub.s32 %s23, %s30
      %p32 = scmp.eq.s32.totalorder %s31, 0
      %s34 = sadd.s32 %s33, 1
      %s35 = scalar_select %p32, %s33, %s34
      %p38 = pneg %p32
      %p39 = scmp.eq.s32.totalorder %s23, 1
      %p40 = por %p38, %p39
      %p41 = scmp.ne.s32.totalorder %s33, %s36
      %p42 = scmp.eq.s32.totalorder %s23, 0
      %p43 = por %p41, %p42
      %p44 = scmp.ne.s32.totalorder %s33, %s36
      %p45 = scmp.eq.s32.totalorder %s28, 1
      %p46 = por %p44, %p45
      %p47 = scmp.ne.s32.totalorder %s36, %s37
      %p48 = scmp.eq.s32.totalorder %s28, 0
      %p49 = por %p47, %p48
      %p50 = scmp.ne.s32.totalorder %s36, %s37
      %p51 = scmp.eq.s32.totalorder %s29, 1
      %p52 = por %p50, %p51
      %p54 = scmp.ne.s32.totalorder %s37, %s53
      %p55 = scmp.eq.s32.totalorder %s29, 0
      %p56 = por %p54, %p55
      %s57 = ssub.s32 %s23, %s30
      %p58 = scmp.eq.s32.totalorder %s57, 0
      %s60 = sadd.s32 %s59, 1
      %s61 = scalar_select %p58, %s59, %s60
      %p64 = pneg %p58
      %p65 = scmp.eq.s32.totalorder %s23, 1
      %p66 = por %p64, %p65
      %p67 = scmp.ne.s32.totalorder %s59, %s62
      %p68 = scmp.eq.s32.totalorder %s23, 0
      %p69 = por %p67, %p68
      %p70 = scmp.ne.s32.totalorder %s59, %s62
      %p71 = scmp.eq.s32.totalorder %s28, 1
      %p72 = por %p70, %p71
      %p73 = scmp.ne.s32.totalorder %s62, %s63
      %p74 = scmp.eq.s32.totalorder %s28, 0
      %p75 = por %p73, %p74
      %p76 = scmp.ne.s32.totalorder %s62, %s63
      %p77 = scmp.eq.s32.totalorder %s29, 1
      %p78 = por %p76, %p77
      %p80 = scmp.ne.s32.totalorder %s63, %s79
      %p81 = scmp.eq.s32.totalorder %s29, 0
      %p82 = por %p80, %p81
      %p83 = scmp.le.s32.totalorder 1, %s23
      %p84 = scmp.lt.s32.totalorder %s23, 3
      %p85 = pnand %p83, %p84
      %p86 = pneg %p85
      // Predicated region
      $region9: #{tpu_custom_call.1} parent=5 // pred_check
        _
      $region10: #{tpu_custom_call.1} parent=5 // pred_check_branch
        %88 = sbr.rel (%p85) target = $region12
      $region11: #{tpu_custom_call.1} parent=5 // pred_region
        %s89 = ssub.s32 %s23, 1
      $region12: #{tpu_custom_call.1} parent=5 // pred_fallthru
        _
      %p90 = scmp.lt.s32.totalorder %s23, 2
      // Predicated region
      $region13: #{tpu_custom_call.1} parent=5 // pred_check
        %p91 = pneg %p90
      $region14: #{tpu_custom_call.1} parent=5 // pred_check_branch
        %93 = sbr.rel (%p91) target = $region16
      $region15: #{tpu_custom_call.1} parent=5 // pred_region
        // Predicated region
        $region17: #{tpu_custom_call.1} parent=15 // pred_check
          %p94 = pneg %p43
        $region18: #{tpu_custom_call.1} parent=15 // pred_check_branch
          %96 = sbr.rel (%p94) target = $region20
        $region19: #{tpu_custom_call.1} parent=15 // pred_region
          %s97 = sand.u32 %s33, 1
          %s98 = scalar_lea.sflag [#allocation6], %s97
          %s99 = sand.u32 %s33, 1
          %s100 = smul.addr %s99, 40
          %s101 = scalar_lea.vmem [#allocation5], %s100
          %s102 = smul.u32 5, %s23
          %s104 = ssub.s32 640, 640
          %105 = vsyncadd %s98, %s104
          %s106 = smul.addr %s102, 128
          %s107 = scalar_lea.hbm %s2, %s106
          %s108 = sshll.u32 %s101, 4
          %s109 = int_to_ptr.vmem [resolvable:$true] %s108
          %114 = dma.hbm_to_vmem [thread:$0]  %s107, 640, %s109, %s98, 128, 128, 8
        $region20: #{tpu_custom_call.1} parent=15 // pred_fallthru
          _
      $region16: #{tpu_custom_call.1} parent=5 // pred_fallthru
        _
      %p115 = scmp.le.s32.totalorder 1, %s23
      %p116 = scmp.lt.s32.totalorder %s23, 3
      %p117 = pnand %p115, %p116
      %p118 = pneg %p117
      // Predicated region
      $region21: #{tpu_custom_call.1} parent=5 // pred_check
        _
      $region22: #{tpu_custom_call.1} parent=5 // pred_check_branch
        %120 = sbr.rel (%p117) target = $region24
      $region23: #{tpu_custom_call.1} parent=5 // pred_region
        %s121 = ssub.s32 %s23, 1
        %s122 = sand.u32 %s36, 1
        %s123 = scalar_lea.sflag [#allocation6], %s122
        %s124 = sand.u32 %s36, 1
        %s125 = smul.addr %s124, 40
        %s126 = scalar_lea.vmem [#allocation5], %s125
        // Predicated region
        $region25: #{tpu_custom_call.1} parent=23 // pred_check
          %p127 = pneg %p49
        $region26: #{tpu_custom_call.1} parent=23 // pred_check_branch
          %129 = sbr.rel (%p127) target = $region28
        $region27: #{tpu_custom_call.1} parent=23 // pred_region
          %130 = dma.done %s123, 640
        $region28: #{tpu_custom_call.1} parent=23 // pred_fallthru
          _
        %s131 = sand.u32 %s36, 1
        %s132 = scalar_lea.sflag [#allocation6], %s131
        %s133 = sand.u32 %s36, 1
        %s134 = smul.addr %s133, 40
        %s135 = scalar_lea.vmem [#allocation5], %s134
        %p136 = pneg %p49
        %p137 = pneg %p46
        %p138 = pneg %p75
        %p139 = pneg %p72
        %s140 = sand.u32 %s62, 1
        %s141 = scalar_lea.sflag [#allocation7], %s140
        %s142 = sand.u32 %s62, 1
        %s143 = smul.addr %s142, 40
        %s144 = scalar_lea.vmem [#allocation8], %s143
        %s145 = smul.u32 5, %s28
        %s146 = smul.u32 5, %s28
        %s147 = sld [smem:[#allocation3 + %s28]]
        %s148 = sld [smem:[#allocation4 + %s28]]
        %v149 = vlaneseq
        %v150 = vshrl.u32 %v149, 7
        %v151 = vlaneseq
        %v152 = vand.u32 %v151, 127
        %v153 = vstv %s147
        %vm154 = vcmp.lt.s32.totalorder %v150, %v153
        %v155 = vstv %s148
        %vm156 = vcmp.lt.s32.totalorder %v152, %v155
        %vm157 = vmand %vm154, %vm156
        %v158 = vld [vmem:[%s126] sm:$0xff]
        %v159 = vld [vmem:[%s126 + $0x8] sm:$0xff]
        %v160 = vld [vmem:[%s126 + $0x10] sm:$0xff]
        %v161 = vld [vmem:[%s126 + $0x18] sm:$0xff]
        %v162 = vld [vmem:[%s126 + $0x20] sm:$0xff]
        %v163 = vsel %vm157, 1, 0
        %vm164 = vcmp.eq.s32.totalorder %v163, 1
        %v165 = vsel %vm164, %v158, -inf
        %v166 = vsel %vm164, %v159, -inf
        %v167 = vsel %vm164, %v160, -inf
        %v168 = vsel %vm164, %v161, -inf
        %v169 = vsel %vm164, %v162, -inf
        %170 = vmax.xlane.f32.xlu0 %v165
        %v171 = vpop.xlane.xlu0 %170
        %172 = vmax.xlane.f32.xlu0 %v166
        %v173 = vpop.xlane.xlu0 %172
        %174 = vmax.xlane.f32.xlu0 %v167
        %v175 = vpop.xlane.xlu0 %174
        %176 = vmax.xlane.f32.xlu0 %v168
        %v177 = vpop.xlane.xlu0 %176
        %178 = vmax.xlane.f32.xlu0 %v169
        %v179 = vpop.xlane.xlu0 %178
        %v180 = vmax.f32 %v171, -1e+30
        %v181 = vmax.f32 %v173, -1e+30
        %v182 = vmax.f32 %v175, -1e+30
        %v183 = vmax.f32 %v177, -1e+30
        %v184 = vmax.f32 %v179, -1e+30
        %v185 = vsub.f32 %v165, %v180
        %v186 = vsub.f32 %v166, %v181
        %v187 = vsub.f32 %v167, %v182
        %v188 = vsub.f32 %v168, %v183
        %v189 = vsub.f32 %v169, %v184
        %v190 = vmul.f32 %v185, 1.442695
        %v191 = vpow.pop %v190
        %v192 = vmul.f32 %v186, 1.442695
        %v193 = vpow.pop %v192
        %v194 = vmul.f32 %v187, 1.442695
        %v195 = vpow.pop %v194
        %v196 = vmul.f32 %v188, 1.442695
        %v197 = vpow.pop %v196
        %v198 = vmul.f32 %v189, 1.442695
        %v199 = vpow.pop %v198
        %200 = vadd.xlane.f32.xlu0 %v191
        %v201 = vpop.xlane.xlu0 %200
        %202 = vadd.xlane.f32.xlu0 %v193
        %v203 = vpop.xlane.xlu0 %202
        %204 = vadd.xlane.f32.xlu0 %v195
        %v205 = vpop.xlane.xlu0 %204
        %206 = vadd.xlane.f32.xlu0 %v197
        %v207 = vpop.xlane.xlu0 %206
        %208 = vadd.xlane.f32.xlu0 %v199
        %v209 = vpop.xlane.xlu0 %208
        %v210 = vadd.f32 %v201, 1e-30
        %v211 = vadd.f32 %v203, 1e-30
        %v212 = vadd.f32 %v205, 1e-30
        %v213 = vadd.f32 %v207, 1e-30
        %v214 = vadd.f32 %v209, 1e-30
        %v215 = vlog2.pop %v210
        %v216 = vmul.f32 %v215, 0.6931472
        %v217 = vlog2.pop %v211
        %v218 = vmul.f32 %v217, 0.6931472
        %v219 = vlog2.pop %v212
        %v220 = vmul.f32 %v219, 0.6931472
        %v221 = vlog2.pop %v213
        %v222 = vmul.f32 %v221, 0.6931472
        %v223 = vlog2.pop %v214
        %v224 = vmul.f32 %v223, 0.6931472
        %v225 = vadd.f32 %v180, %v216
        %v226 = vadd.f32 %v181, %v218
        %v227 = vadd.f32 %v182, %v220
        %v228 = vadd.f32 %v183, %v222
        %v229 = vadd.f32 %v184, %v224
        %v230 = vsub.f32 %v165, %v225
        %v231 = vsub.f32 %v166, %v226
        %v232 = vsub.f32 %v167, %v227
        %v233 = vsub.f32 %v168, %v228
        %v234 = vsub.f32 %v169, %v229
        %v235 = vrot.slane %v230, 4
        %v236 = vmax.f32 %v230, %v235
        %v237 = vrot.slane %v236, 2
        %v238 = vmax.f32 %v236, %v237
        %v239 = vrot.slane %v238, 1
        %v240 = vmax.f32 %v238, %v239
        %v241 = vrot.slane %v231, 4
        %v242 = vmax.f32 %v231, %v241
        %v243 = vrot.slane %v242, 2
        %v244 = vmax.f32 %v242, %v243
        %v245 = vrot.slane %v244, 1
        %v246 = vmax.f32 %v244, %v245
        %v247 = vrot.slane %v232, 4
        %v248 = vmax.f32 %v232, %v247
        %v249 = vrot.slane %v248, 2
        %v250 = vmax.f32 %v248, %v249
        %v251 = vrot.slane %v250, 1
        %v252 = vmax.f32 %v250, %v251
        %v253 = vrot.slane %v233, 4
        %v254 = vmax.f32 %v233, %v253
        %v255 = vrot.slane %v254, 2
        %v256 = vmax.f32 %v254, %v255
        %v257 = vrot.slane %v256, 1
        %v258 = vmax.f32 %v256, %v257
        %v259 = vrot.slane %v234, 4
        %v260 = vmax.f32 %v234, %v259
        %v261 = vrot.slane %v260, 2
        %v262 = vmax.f32 %v260, %v261
        %v263 = vrot.slane %v262, 1
        %v264 = vmax.f32 %v262, %v263
        %v265 = vmax.f32 %v240, -1e+30
        %v266 = vmax.f32 %v246, -1e+30
        %v267 = vmax.f32 %v252, -1e+30
        %v268 = vmax.f32 %v258, -1e+30
        %v269 = vmax.f32 %v264, -1e+30
        %v270 = vsub.f32 %v230, %v265
        %v271 = vsub.f32 %v231, %v266
        %v272 = vsub.f32 %v232, %v267
        %v273 = vsub.f32 %v233, %v268
        %v274 = vsub.f32 %v234, %v269
        %v275 = vmul.f32 %v270, 1.442695
        %v276 = vpow.pop %v275
        %v277 = vmul.f32 %v271, 1.442695
        %v278 = vpow.pop %v277
        %v279 = vmul.f32 %v272, 1.442695
        %v280 = vpow.pop %v279
        %v281 = vmul.f32 %v273, 1.442695
        %v282 = vpow.pop %v281
        %v283 = vmul.f32 %v274, 1.442695
        %v284 = vpow.pop %v283
        %v285 = vrot.slane %v276, 4
        %v286 = vadd.f32 %v276, %v285
        %v287 = vrot.slane %v286, 2
        %v288 = vadd.f32 %v286, %v287
        %v289 = vrot.slane %v288, 1
        %v290 = vadd.f32 %v288, %v289
        %v291 = vrot.slane %v278, 4
        %v292 = vadd.f32 %v278, %v291
        %v293 = vrot.slane %v292, 2
        %v294 = vadd.f32 %v292, %v293
        %v295 = vrot.slane %v294, 1
        %v296 = vadd.f32 %v294, %v295
        %v297 = vrot.slane %v280, 4
        %v298 = vadd.f32 %v280, %v297
        %v299 = vrot.slane %v298, 2
        %v300 = vadd.f32 %v298, %v299
        %v301 = vrot.slane %v300, 1
        %v302 = vadd.f32 %v300, %v301
        %v303 = vrot.slane %v282, 4
        %v304 = vadd.f32 %v282, %v303
        %v305 = vrot.slane %v304, 2
        %v306 = vadd.f32 %v304, %v305
        %v307 = vrot.slane %v306, 1
        %v308 = vadd.f32 %v306, %v307
        %v309 = vrot.slane %v284, 4
        %v310 = vadd.f32 %v284, %v309
        %v311 = vrot.slane %v310, 2
        %v312 = vadd.f32 %v310, %v311
        %v313 = vrot.slane %v312, 1
        %v314 = vadd.f32 %v312, %v313
        %v315 = vadd.f32 %v290, 1e-30
        %v316 = vadd.f32 %v296, 1e-30
        %v317 = vadd.f32 %v302, 1e-30
        %v318 = vadd.f32 %v308, 1e-30
        %v319 = vadd.f32 %v314, 1e-30
        %v320 = vlog2.pop %v315
        %v321 = vmul.f32 %v320, 0.6931472
        %v322 = vlog2.pop %v316
        %v323 = vmul.f32 %v322, 0.6931472
        %v324 = vlog2.pop %v317
        %v325 = vmul.f32 %v324, 0.6931472
        %v326 = vlog2.pop %v318
        %v327 = vmul.f32 %v326, 0.6931472
        %v328 = vlog2.pop %v319
        %v329 = vmul.f32 %v328, 0.6931472
        %v330 = vadd.f32 %v265, %v321
        %v331 = vadd.f32 %v266, %v323
        %v332 = vadd.f32 %v267, %v325
        %v333 = vadd.f32 %v268, %v327
        %v334 = vadd.f32 %v269, %v329
        %v335 = vsub.f32 %v230, %v330
        %v336 = vsub.f32 %v231, %v331
        %v337 = vsub.f32 %v232, %v332
        %v338 = vsub.f32 %v233, %v333
        %v339 = vsub.f32 %v234, %v334
        %340 = vmax.xlane.f32.xlu0 %v335
        %v341 = vpop.xlane.xlu0 %340
        %342 = vmax.xlane.f32.xlu0 %v336
        %v343 = vpop.xlane.xlu0 %342
        %344 = vmax.xlane.f32.xlu0 %v337
        %v345 = vpop.xlane.xlu0 %344
        %346 = vmax.xlane.f32.xlu0 %v338
        %v347 = vpop.xlane.xlu0 %346
        %348 = vmax.xlane.f32.xlu0 %v339
        %v349 = vpop.xlane.xlu0 %348
        %v350 = vmax.f32 %v341, -1e+30
        %v351 = vmax.f32 %v343, -1e+30
        %v352 = vmax.f32 %v345, -1e+30
        %v353 = vmax.f32 %v347, -1e+30
        %v354 = vmax.f32 %v349, -1e+30
        %v355 = vsub.f32 %v335, %v350
        %v356 = vsub.f32 %v336, %v351
        %v357 = vsub.f32 %v337, %v352
        %v358 = vsub.f32 %v338, %v353
        %v359 = vsub.f32 %v339, %v354
        %v360 = vmul.f32 %v355, 1.442695
        %v361 = vpow.pop %v360
        %v362 = vmul.f32 %v356, 1.442695
        %v363 = vpow.pop %v362
        %v364 = vmul.f32 %v357, 1.442695
        %v365 = vpow.pop %v364
        %v366 = vmul.f32 %v358, 1.442695
        %v367 = vpow.pop %v366
        %v368 = vmul.f32 %v359, 1.442695
        %v369 = vpow.pop %v368
        %370 = vadd.xlane.f32.xlu0 %v361
        %v371 = vpop.xlane.xlu0 %370
        %372 = vadd.xlane.f32.xlu0 %v363
        %v373 = vpop.xlane.xlu0 %372
        %374 = vadd.xlane.f32.xlu0 %v365
        %v375 = vpop.xlane.xlu0 %374
        %376 = vadd.xlane.f32.xlu0 %v367
        %v377 = vpop.xlane.xlu0 %376
        %378 = vadd.xlane.f32.xlu0 %v369
        %v379 = vpop.xlane.xlu0 %378
        %v380 = vadd.f32 %v371, 1e-30
        %v381 = vadd.f32 %v373, 1e-30
        %v382 = vadd.f32 %v375, 1e-30
        %v383 = vadd.f32 %v377, 1e-30
        %v384 = vadd.f32 %v379, 1e-30
        %v385 = vlog2.pop %v380
        %v386 = vmul.f32 %v385, 0.6931472
        %v387 = vlog2.pop %v381
        %v388 = vmul.f32 %v387, 0.6931472
        %v389 = vlog2.pop %v382
        %v390 = vmul.f32 %v389, 0.6931472
        %v391 = vlog2.pop %v383
        %v392 = vmul.f32 %v391, 0.6931472
        %v393 = vlog2.pop %v384
        %v394 = vmul.f32 %v393, 0.6931472
        %v395 = vadd.f32 %v350, %v386
        %v396 = vadd.f32 %v351, %v388
        %v397 = vadd.f32 %v352, %v390
        %v398 = vadd.f32 %v353, %v392
        %v399 = vadd.f32 %v354, %v394
        %v400 = vsub.f32 %v335, %v395
        %v401 = vsub.f32 %v336, %v396
        %v402 = vsub.f32 %v337, %v397
        %v403 = vsub.f32 %v338, %v398
        %v404 = vsub.f32 %v339, %v399
        %v405 = vrot.slane %v400, 4
        %v406 = vmax.f32 %v400, %v405
        %v407 = vrot.slane %v406, 2
        %v408 = vmax.f32 %v406, %v407
        %v409 = vrot.slane %v408, 1
        %v410 = vmax.f32 %v408, %v409
        %v411 = vrot.slane %v401, 4
        %v412 = vmax.f32 %v401, %v411
        %v413 = vrot.slane %v412, 2
        %v414 = vmax.f32 %v412, %v413
        %v415 = vrot.slane %v414, 1
        %v416 = vmax.f32 %v414, %v415
        %v417 = vrot.slane %v402, 4
        %v418 = vmax.f32 %v402, %v417
        %v419 = vrot.slane %v418, 2
        %v420 = vmax.f32 %v418, %v419
        %v421 = vrot.slane %v420, 1
        %v422 = vmax.f32 %v420, %v421
        %v423 = vrot.slane %v403, 4
        %v424 = vmax.f32 %v403, %v423
        %v425 = vrot.slane %v424, 2
        %v426 = vmax.f32 %v424, %v425
        %v427 = vrot.slane %v426, 1
        %v428 = vmax.f32 %v426, %v427
        %v429 = vrot.slane %v404, 4
        %v430 = vmax.f32 %v404, %v429
        %v431 = vrot.slane %v430, 2
        %v432 = vmax.f32 %v430, %v431
        %v433 = vrot.slane %v432, 1
        %v434 = vmax.f32 %v432, %v433
        %v435 = vmax.f32 %v410, -1e+30
        %v436 = vmax.f32 %v416, -1e+30
        %v437 = vmax.f32 %v422, -1e+30
        %v438 = vmax.f32 %v428, -1e+30
        %v439 = vmax.f32 %v434, -1e+30
        %v440 = vsub.f32 %v400, %v435
        %v441 = vsub.f32 %v401, %v436
        %v442 = vsub.f32 %v402, %v437
        %v443 = vsub.f32 %v403, %v438
        %v444 = vsub.f32 %v404, %v439
        %v445 = vmul.f32 %v440, 1.442695
        %v446 = vpow.pop %v445
        %v447 = vmul.f32 %v441, 1.442695
        %v448 = vpow.pop %v447
        %v449 = vmul.f32 %v442, 1.442695
        %v450 = vpow.pop %v449
        %v451 = vmul.f32 %v443, 1.442695
        %v452 = vpow.pop %v451
        %v453 = vmul.f32 %v444, 1.442695
        %v454 = vpow.pop %v453
        %v455 = vrot.slane %v446, 4
        %v456 = vadd.f32 %v446, %v455
        %v457 = vrot.slane %v456, 2
        %v458 = vadd.f32 %v456, %v457
        %v459 = vrot.slane %v458, 1
        %v460 = vadd.f32 %v458, %v459
        %v461 = vrot.slane %v448, 4
        %v462 = vadd.f32 %v448, %v461
        %v463 = vrot.slane %v462, 2
        %v464 = vadd.f32 %v462, %v463
        %v465 = vrot.slane %v464, 1
        %v466 = vadd.f32 %v464, %v465
        %v467 = vrot.slane %v450, 4
        %v468 = vadd.f32 %v450, %v467
        %v469 = vrot.slane %v468, 2
        %v470 = vadd.f32 %v468, %v469
        %v471 = vrot.slane %v470, 1
        %v472 = vadd.f32 %v470, %v471
        %v473 = vrot.slane %v452, 4
        %v474 = vadd.f32 %v452, %v473
        %v475 = vrot.slane %v474, 2
        %v476 = vadd.f32 %v474, %v475
        %v477 = vrot.slane %v476, 1
        %v478 = vadd.f32 %v476, %v477
        %v479 = vrot.slane %v454, 4
        %v480 = vadd.f32 %v454, %v479
        %v481 = vrot.slane %v480, 2
        %v482 = vadd.f32 %v480, %v481
        %v483 = vrot.slane %v482, 1
        %v484 = vadd.f32 %v482, %v483
        %v485 = vadd.f32 %v460, 1e-30
        %v486 = vadd.f32 %v466, 1e-30
        %v487 = vadd.f32 %v472, 1e-30
        %v488 = vadd.f32 %v478, 1e-30
        %v489 = vadd.f32 %v484, 1e-30
        %v490 = vlog2.pop %v485
        %v491 = vmul.f32 %v490, 0.6931472
        %v492 = vlog2.pop %v486
        %v493 = vmul.f32 %v492, 0.6931472
        %v494 = vlog2.pop %v487
        %v495 = vmul.f32 %v494, 0.6931472
        %v496 = vlog2.pop %v488
        %v497 = vmul.f32 %v496, 0.6931472
        %v498 = vlog2.pop %v489
        %v499 = vmul.f32 %v498, 0.6931472
        %v500 = vadd.f32 %v435, %v491
        %v501 = vadd.f32 %v436, %v493
        %v502 = vadd.f32 %v437, %v495
        %v503 = vadd.f32 %v438, %v497
        %v504 = vadd.f32 %v439, %v499
        %v505 = vsub.f32 %v400, %v500
        %v506 = vsub.f32 %v401, %v501
        %v507 = vsub.f32 %v402, %v502
        %v508 = vsub.f32 %v403, %v503
        %v509 = vsub.f32 %v404, %v504
        %510 = vmax.xlane.f32.xlu0 %v505
        %v511 = vpop.xlane.xlu0 %510
        %512 = vmax.xlane.f32.xlu0 %v506
        %v513 = vpop.xlane.xlu0 %512
        %514 = vmax.xlane.f32.xlu0 %v507
        %v515 = vpop.xlane.xlu0 %514
        %516 = vmax.xlane.f32.xlu0 %v508
        %v517 = vpop.xlane.xlu0 %516
        %518 = vmax.xlane.f32.xlu0 %v509
        %v519 = vpop.xlane.xlu0 %518
        %v520 = vmax.f32 %v511, -1e+30
        %v521 = vmax.f32 %v513, -1e+30
        %v522 = vmax.f32 %v515, -1e+30
        %v523 = vmax.f32 %v517, -1e+30
        %v524 = vmax.f32 %v519, -1e+30
        %v525 = vsub.f32 %v505, %v520
        %v526 = vsub.f32 %v506, %v521
        %v527 = vsub.f32 %v507, %v522
        %v528 = vsub.f32 %v508, %v523
        %v529 = vsub.f32 %v509, %v524
        %v530 = vmul.f32 %v525, 1.442695
        %v531 = vpow.pop %v530
        %v532 = vmul.f32 %v526, 1.442695
        %v533 = vpow.pop %v532
        %v534 = vmul.f32 %v527, 1.442695
        %v535 = vpow.pop %v534
        %v536 = vmul.f32 %v528, 1.442695
        %v537 = vpow.pop %v536
        %v538 = vmul.f32 %v529, 1.442695
        %v539 = vpow.pop %v538
        %540 = vadd.xlane.f32.xlu0 %v531
        %v541 = vpop.xlane.xlu0 %540
        %542 = vadd.xlane.f32.xlu0 %v533
        %v543 = vpop.xlane.xlu0 %542
        %544 = vadd.xlane.f32.xlu0 %v535
        %v545 = vpop.xlane.xlu0 %544
        %546 = vadd.xlane.f32.xlu0 %v537
        %v547 = vpop.xlane.xlu0 %546
        %548 = vadd.xlane.f32.xlu0 %v539
        %v549 = vpop.xlane.xlu0 %548
        %v550 = vadd.f32 %v541, 1e-30
        %v551 = vadd.f32 %v543, 1e-30
        %v552 = vadd.f32 %v545, 1e-30
        %v553 = vadd.f32 %v547, 1e-30
        %v554 = vadd.f32 %v549, 1e-30
        %v555 = vlog2.pop %v550
        %v556 = vmul.f32 %v555, 0.6931472
        %v557 = vlog2.pop %v551
        %v558 = vmul.f32 %v557, 0.6931472
        %v559 = vlog2.pop %v552
        %v560 = vmul.f32 %v559, 0.6931472
        %v561 = vlog2.pop %v553
        %v562 = vmul.f32 %v561, 0.6931472
        %v563 = vlog2.pop %v554
        %v564 = vmul.f32 %v563, 0.6931472
        %v565 = vadd.f32 %v520, %v556
        %v566 = vadd.f32 %v521, %v558
        %v567 = vadd.f32 %v522, %v560
        %v568 = vadd.f32 %v523, %v562
        %v569 = vadd.f32 %v524, %v564
        %v570 = vsub.f32 %v505, %v565
        %v571 = vsub.f32 %v506, %v566
        %v572 = vsub.f32 %v507, %v567
        %v573 = vsub.f32 %v508, %v568
        %v574 = vsub.f32 %v509, %v569
        %v575 = vrot.slane %v570, 4
        %v576 = vmax.f32 %v570, %v575
        %v577 = vrot.slane %v576, 2
        %v578 = vmax.f32 %v576, %v577
        %v579 = vrot.slane %v578, 1
        %v580 = vmax.f32 %v578, %v579
        %v581 = vrot.slane %v571, 4
        %v582 = vmax.f32 %v571, %v581
        %v583 = vrot.slane %v582, 2
        %v584 = vmax.f32 %v582, %v583
        %v585 = vrot.slane %v584, 1
        %v586 = vmax.f32 %v584, %v585
        %v587 = vrot.slane %v572, 4
        %v588 = vmax.f32 %v572, %v587
        %v589 = vrot.slane %v588, 2
        %v590 = vmax.f32 %v588, %v589
        %v591 = vrot.slane %v590, 1
        %v592 = vmax.f32 %v590, %v591
        %v593 = vrot.slane %v573, 4
        %v594 = vmax.f32 %v573, %v593
        %v595 = vrot.slane %v594, 2
        %v596 = vmax.f32 %v594, %v595
        %v597 = vrot.slane %v596, 1
        %v598 = vmax.f32 %v596, %v597
        %v599 = vrot.slane %v574, 4
        %v600 = vmax.f32 %v574, %v599
        %v601 = vrot.slane %v600, 2
        %v602 = vmax.f32 %v600, %v601
        %v603 = vrot.slane %v602, 1
        %v604 = vmax.f32 %v602, %v603
        %v605 = vmax.f32 %v580, -1e+30
        %v606 = vmax.f32 %v586, -1e+30
        %v607 = vmax.f32 %v592, -1e+30
        %v608 = vmax.f32 %v598, -1e+30
        %v609 = vmax.f32 %v604, -1e+30
        %v610 = vsub.f32 %v570, %v605
        %v611 = vsub.f32 %v571, %v606
        %v612 = vsub.f32 %v572, %v607
        %v613 = vsub.f32 %v573, %v608
        %v614 = vsub.f32 %v574, %v609
        %v615 = vmul.f32 %v610, 1.442695
        %v616 = vpow.pop %v615
        %v617 = vmul.f32 %v611, 1.442695
        %v618 = vpow.pop %v617
        %v619 = vmul.f32 %v612, 1.442695
        %v620 = vpow.pop %v619
        %v621 = vmul.f32 %v613, 1.442695
        %v622 = vpow.pop %v621
        %v623 = vmul.f32 %v614, 1.442695
        %v624 = vpow.pop %v623
        %v625 = vrot.slane %v616, 4
        %v626 = vadd.f32 %v616, %v625
        %v627 = vrot.slane %v626, 2
        %v628 = vadd.f32 %v626, %v627
        %v629 = vrot.slane %v628, 1
        %v630 = vadd.f32 %v628, %v629
        %v631 = vrot.slane %v618, 4
        %v632 = vadd.f32 %v618, %v631
        %v633 = vrot.slane %v632, 2
        %v634 = vadd.f32 %v632, %v633
        %v635 = vrot.slane %v634, 1
        %v636 = vadd.f32 %v634, %v635
        %v637 = vrot.slane %v620, 4
        %v638 = vadd.f32 %v620, %v637
        %v639 = vrot.slane %v638, 2
        %v640 = vadd.f32 %v638, %v639
        %v641 = vrot.slane %v640, 1
        %v642 = vadd.f32 %v640, %v641
        %v643 = vrot.slane %v622, 4
        %v644 = vadd.f32 %v622, %v643
        %v645 = vrot.slane %v644, 2
        %v646 = vadd.f32 %v644, %v645
        %v647 = vrot.slane %v646, 1
        %v648 = vadd.f32 %v646, %v647
        %v649 = vrot.slane %v624, 4
        %v650 = vadd.f32 %v624, %v649
        %v651 = vrot.slane %v650, 2
        %v652 = vadd.f32 %v650, %v651
        %v653 = vrot.slane %v652, 1
        %v654 = vadd.f32 %v652, %v653
        %v655 = vadd.f32 %v630, 1e-30
        %v656 = vadd.f32 %v636, 1e-30
        %v657 = vadd.f32 %v642, 1e-30
        %v658 = vadd.f32 %v648, 1e-30
        %v659 = vadd.f32 %v654, 1e-30
        %v660 = vlog2.pop %v655
        %v661 = vmul.f32 %v660, 0.6931472
        %v662 = vlog2.pop %v656
        %v663 = vmul.f32 %v662, 0.6931472
        %v664 = vlog2.pop %v657
        %v665 = vmul.f32 %v664, 0.6931472
        %v666 = vlog2.pop %v658
        %v667 = vmul.f32 %v666, 0.6931472
        %v668 = vlog2.pop %v659
        %v669 = vmul.f32 %v668, 0.6931472
        %v670 = vadd.f32 %v605, %v661
        %v671 = vadd.f32 %v606, %v663
        %v672 = vadd.f32 %v607, %v665
        %v673 = vadd.f32 %v608, %v667
        %v674 = vadd.f32 %v609, %v669
        %v675 = vsub.f32 %v570, %v670
        %v676 = vsub.f32 %v571, %v671
        %v677 = vsub.f32 %v572, %v672
        %v678 = vsub.f32 %v573, %v673
        %v679 = vsub.f32 %v574, %v674
        %680 = vmax.xlane.f32.xlu0 %v675
        %v681 = vpop.xlane.xlu0 %680
        %682 = vmax.xlane.f32.xlu0 %v676
        %v683 = vpop.xlane.xlu0 %682
        %684 = vmax.xlane.f32.xlu0 %v677
        %v685 = vpop.xlane.xlu0 %684
        %686 = vmax.xlane.f32.xlu0 %v678
        %v687 = vpop.xlane.xlu0 %686
        %688 = vmax.xlane.f32.xlu0 %v679
        %v689 = vpop.xlane.xlu0 %688
        %v690 = vmax.f32 %v681, -1e+30
        %v691 = vmax.f32 %v683, -1e+30
        %v692 = vmax.f32 %v685, -1e+30
        %v693 = vmax.f32 %v687, -1e+30
        %v694 = vmax.f32 %v689, -1e+30
        %v695 = vsub.f32 %v675, %v690
        %v696 = vsub.f32 %v676, %v691
        %v697 = vsub.f32 %v677, %v692
        %v698 = vsub.f32 %v678, %v693
        %v699 = vsub.f32 %v679, %v694
        %v700 = vmul.f32 %v695, 1.442695
        %v701 = vpow.pop %v700
        %v702 = vmul.f32 %v696, 1.442695
        %v703 = vpow.pop %v702
        %v704 = vmul.f32 %v697, 1.442695
        %v705 = vpow.pop %v704
        %v706 = vmul.f32 %v698, 1.442695
        %v707 = vpow.pop %v706
        %v708 = vmul.f32 %v699, 1.442695
        %v709 = vpow.pop %v708
        %710 = vadd.xlane.f32.xlu0 %v701
        %v711 = vpop.xlane.xlu0 %710
        %712 = vadd.xlane.f32.xlu0 %v703
        %v713 = vpop.xlane.xlu0 %712
        %714 = vadd.xlane.f32.xlu0 %v705
        %v715 = vpop.xlane.xlu0 %714
        %716 = vadd.xlane.f32.xlu0 %v707
        %v717 = vpop.xlane.xlu0 %716
        %718 = vadd.xlane.f32.xlu0 %v709
        %v719 = vpop.xlane.xlu0 %718
        %v720 = vadd.f32 %v711, 1e-30
        %v721 = vadd.f32 %v713, 1e-30
        %v722 = vadd.f32 %v715, 1e-30
        %v723 = vadd.f32 %v717, 1e-30
        %v724 = vadd.f32 %v719, 1e-30
        %v725 = vlog2.pop %v720
        %v726 = vmul.f32 %v725, 0.6931472
        %v727 = vlog2.pop %v721
        %v728 = vmul.f32 %v727, 0.6931472
        %v729 = vlog2.pop %v722
        %v730 = vmul.f32 %v729, 0.6931472
        %v731 = vlog2.pop %v723
        %v732 = vmul.f32 %v731, 0.6931472
        %v733 = vlog2.pop %v724
        %v734 = vmul.f32 %v733, 0.6931472
        %v735 = vadd.f32 %v690, %v726
        %v736 = vadd.f32 %v691, %v728
        %v737 = vadd.f32 %v692, %v730
        %v738 = vadd.f32 %v693, %v732
        %v739 = vadd.f32 %v694, %v734
        %v740 = vsub.f32 %v675, %v735
        %v741 = vsub.f32 %v676, %v736
        %v742 = vsub.f32 %v677, %v737
        %v743 = vsub.f32 %v678, %v738
        %v744 = vsub.f32 %v679, %v739
        %v745 = vrot.slane %v740, 4
        %v746 = vmax.f32 %v740, %v745
        %v747 = vrot.slane %v746, 2
        %v748 = vmax.f32 %v746, %v747
        %v749 = vrot.slane %v748, 1
        %v750 = vmax.f32 %v748, %v749
        %v751 = vrot.slane %v741, 4
        %v752 = vmax.f32 %v741, %v751
        %v753 = vrot.slane %v752, 2
        %v754 = vmax.f32 %v752, %v753
        %v755 = vrot.slane %v754, 1
        %v756 = vmax.f32 %v754, %v755
        %v757 = vrot.slane %v742, 4
        %v758 = vmax.f32 %v742, %v757
        %v759 = vrot.slane %v758, 2
        %v760 = vmax.f32 %v758, %v759
        %v761 = vrot.slane %v760, 1
        %v762 = vmax.f32 %v760, %v761
        %v763 = vrot.slane %v743, 4
        %v764 = vmax.f32 %v743, %v763
        %v765 = vrot.slane %v764, 2
        %v766 = vmax.f32 %v764, %v765
        %v767 = vrot.slane %v766, 1
        %v768 = vmax.f32 %v766, %v767
        %v769 = vrot.slane %v744, 4
        %v770 = vmax.f32 %v744, %v769
        %v771 = vrot.slane %v770, 2
        %v772 = vmax.f32 %v770, %v771
        %v773 = vrot.slane %v772, 1
        %v774 = vmax.f32 %v772, %v773
        %v775 = vmax.f32 %v750, -1e+30
        %v776 = vmax.f32 %v756, -1e+30
        %v777 = vmax.f32 %v762, -1e+30
        %v778 = vmax.f32 %v768, -1e+30
        %v779 = vmax.f32 %v774, -1e+30
        %v780 = vsub.f32 %v740, %v775
        %v781 = vsub.f32 %v741, %v776
        %v782 = vsub.f32 %v742, %v777
        %v783 = vsub.f32 %v743, %v778
        %v784 = vsub.f32 %v744, %v779
        %v785 = vmul.f32 %v780, 1.442695
        %v786 = vpow.pop %v785
        %v787 = vmul.f32 %v781, 1.442695
        %v788 = vpow.pop %v787
        %v789 = vmul.f32 %v782, 1.442695
        %v790 = vpow.pop %v789
        %v791 = vmul.f32 %v783, 1.442695
        %v792 = vpow.pop %v791
        %v793 = vmul.f32 %v784, 1.442695
        %v794 = vpow.pop %v793
        %v795 = vrot.slane %v786, 4
        %v796 = vadd.f32 %v786, %v795
        %v797 = vrot.slane %v796, 2
        %v798 = vadd.f32 %v796, %v797
        %v799 = vrot.slane %v798, 1
        %v800 = vadd.f32 %v798, %v799
        %v801 = vrot.slane %v788, 4
        %v802 = vadd.f32 %v788, %v801
        %v803 = vrot.slane %v802, 2
        %v804 = vadd.f32 %v802, %v803
        %v805 = vrot.slane %v804, 1
        %v806 = vadd.f32 %v804, %v805
        %v807 = vrot.slane %v790, 4
        %v808 = vadd.f32 %v790, %v807
        %v809 = vrot.slane %v808, 2
        %v810 = vadd.f32 %v808, %v809
        %v811 = vrot.slane %v810, 1
        %v812 = vadd.f32 %v810, %v811
        %v813 = vrot.slane %v792, 4
        %v814 = vadd.f32 %v792, %v813
        %v815 = vrot.slane %v814, 2
        %v816 = vadd.f32 %v814, %v815
        %v817 = vrot.slane %v816, 1
        %v818 = vadd.f32 %v816, %v817
        %v819 = vrot.slane %v794, 4
        %v820 = vadd.f32 %v794, %v819
        %v821 = vrot.slane %v820, 2
        %v822 = vadd.f32 %v820, %v821
        %v823 = vrot.slane %v822, 1
        %v824 = vadd.f32 %v822, %v823
        %v825 = vadd.f32 %v800, 1e-30
        %v826 = vadd.f32 %v806, 1e-30
        %v827 = vadd.f32 %v812, 1e-30
        %v828 = vadd.f32 %v818, 1e-30
        %v829 = vadd.f32 %v824, 1e-30
        %v830 = vlog2.pop %v825
        %v831 = vmul.f32 %v830, 0.6931472
        %v832 = vlog2.pop %v826
        %v833 = vmul.f32 %v832, 0.6931472
        %v834 = vlog2.pop %v827
        %v835 = vmul.f32 %v834, 0.6931472
        %v836 = vlog2.pop %v828
        %v837 = vmul.f32 %v836, 0.6931472
        %v838 = vlog2.pop %v829
        %v839 = vmul.f32 %v838, 0.6931472
        %v840 = vadd.f32 %v775, %v831
        %v841 = vadd.f32 %v776, %v833
        %v842 = vadd.f32 %v777, %v835
        %v843 = vadd.f32 %v778, %v837
        %v844 = vadd.f32 %v779, %v839
        %v845 = vsub.f32 %v740, %v840
        %v846 = vsub.f32 %v741, %v841
        %v847 = vsub.f32 %v742, %v842
        %v848 = vsub.f32 %v743, %v843
        %v849 = vsub.f32 %v744, %v844
        %850 = vmax.xlane.f32.xlu0 %v845
        %v851 = vpop.xlane.xlu0 %850
        %852 = vmax.xlane.f32.xlu0 %v846
        %v853 = vpop.xlane.xlu0 %852
        %854 = vmax.xlane.f32.xlu0 %v847
        %v855 = vpop.xlane.xlu0 %854
        %856 = vmax.xlane.f32.xlu0 %v848
        %v857 = vpop.xlane.xlu0 %856
        %858 = vmax.xlane.f32.xlu0 %v849
        %v859 = vpop.xlane.xlu0 %858
        %v860 = vmax.f32 %v851, -1e+30
        %v861 = vmax.f32 %v853, -1e+30
        %v862 = vmax.f32 %v855, -1e+30
        %v863 = vmax.f32 %v857, -1e+30
        %v864 = vmax.f32 %v859, -1e+30
        %v865 = vsub.f32 %v845, %v860
        %v866 = vsub.f32 %v846, %v861
        %v867 = vsub.f32 %v847, %v862
        %v868 = vsub.f32 %v848, %v863
        %v869 = vsub.f32 %v849, %v864
        %v870 = vmul.f32 %v865, 1.442695
        %v871 = vpow.pop %v870
        %v872 = vmul.f32 %v866, 1.442695
        %v873 = vpow.pop %v872
        %v874 = vmul.f32 %v867, 1.442695
        %v875 = vpow.pop %v874
        %v876 = vmul.f32 %v868, 1.442695
        %v877 = vpow.pop %v876
        %v878 = vmul.f32 %v869, 1.442695
        %v879 = vpow.pop %v878
        %880 = vadd.xlane.f32.xlu0 %v871
        %v881 = vpop.xlane.xlu0 %880
        %882 = vadd.xlane.f32.xlu0 %v873
        %v883 = vpop.xlane.xlu0 %882
        %884 = vadd.xlane.f32.xlu0 %v875
        %v885 = vpop.xlane.xlu0 %884
        %886 = vadd.xlane.f32.xlu0 %v877
        %v887 = vpop.xlane.xlu0 %886
        %888 = vadd.xlane.f32.xlu0 %v879
        %v889 = vpop.xlane.xlu0 %888
        %v890 = vadd.f32 %v881, 1e-30
        %v891 = vadd.f32 %v883, 1e-30
        %v892 = vadd.f32 %v885, 1e-30
        %v893 = vadd.f32 %v887, 1e-30
        %v894 = vadd.f32 %v889, 1e-30
        %v895 = vlog2.pop %v890
        %v896 = vmul.f32 %v895, 0.6931472
        %v897 = vlog2.pop %v891
        %v898 = vmul.f32 %v897, 0.6931472
        %v899 = vlog2.pop %v892
        %v900 = vmul.f32 %v899, 0.6931472
        %v901 = vlog2.pop %v893
        %v902 = vmul.f32 %v901, 0.6931472
        %v903 = vlog2.pop %v894
        %v904 = vmul.f32 %v903, 0.6931472
        %v905 = vadd.f32 %v860, %v896
        %v906 = vadd.f32 %v861, %v898
        %v907 = vadd.f32 %v862, %v900
        %v908 = vadd.f32 %v863, %v902
        %v909 = vadd.f32 %v864, %v904
        %v910 = vsub.f32 %v845, %v905
        %v911 = vsub.f32 %v846, %v906
        %v912 = vsub.f32 %v847, %v907
        %v913 = vsub.f32 %v848, %v908
        %v914 = vsub.f32 %v849, %v909
        %v915 = vrot.slane %v910, 4
        %v916 = vmax.f32 %v910, %v915
        %v917 = vrot.slane %v916, 2
        %v918 = vmax.f32 %v916, %v917
        %v919 = vrot.slane %v918, 1
        %v920 = vmax.f32 %v918, %v919
        %v921 = vrot.slane %v911, 4
        %v922 = vmax.f32 %v911, %v921
        %v923 = vrot.slane %v922, 2
        %v924 = vmax.f32 %v922, %v923
        %v925 = vrot.slane %v924, 1
        %v926 = vmax.f32 %v924, %v925
        %v927 = vrot.slane %v912, 4
        %v928 = vmax.f32 %v912, %v927
        %v929 = vrot.slane %v928, 2
        %v930 = vmax.f32 %v928, %v929
        %v931 = vrot.slane %v930, 1
        %v932 = vmax.f32 %v930, %v931
        %v933 = vrot.slane %v913, 4
        %v934 = vmax.f32 %v913, %v933
        %v935 = vrot.slane %v934, 2
        %v936 = vmax.f32 %v934, %v935
        %v937 = vrot.slane %v936, 1
        %v938 = vmax.f32 %v936, %v937
        %v939 = vrot.slane %v914, 4
        %v940 = vmax.f32 %v914, %v939
        %v941 = vrot.slane %v940, 2
        %v942 = vmax.f32 %v940, %v941
        %v943 = vrot.slane %v942, 1
        %v944 = vmax.f32 %v942, %v943
        %v945 = vmax.f32 %v920, -1e+30
        %v946 = vmax.f32 %v926, -1e+30
        %v947 = vmax.f32 %v932, -1e+30
        %v948 = vmax.f32 %v938, -1e+30
        %v949 = vmax.f32 %v944, -1e+30
        %v950 = vsub.f32 %v910, %v945
        %v951 = vsub.f32 %v911, %v946
        %v952 = vsub.f32 %v912, %v947
        %v953 = vsub.f32 %v913, %v948
        %v954 = vsub.f32 %v914, %v949
        %v955 = vmul.f32 %v950, 1.442695
        %v956 = vpow.pop %v955
        %v957 = vmul.f32 %v951, 1.442695
        %v958 = vpow.pop %v957
        %v959 = vmul.f32 %v952, 1.442695
        %v960 = vpow.pop %v959
        %v961 = vmul.f32 %v953, 1.442695
        %v962 = vpow.pop %v961
        %v963 = vmul.f32 %v954, 1.442695
        %v964 = vpow.pop %v963
        %v965 = vrot.slane %v956, 4
        %v966 = vadd.f32 %v956, %v965
        %v967 = vrot.slane %v966, 2
        %v968 = vadd.f32 %v966, %v967
        %v969 = vrot.slane %v968, 1
        %v970 = vadd.f32 %v968, %v969
        %v971 = vrot.slane %v958, 4
        %v972 = vadd.f32 %v958, %v971
        %v973 = vrot.slane %v972, 2
        %v974 = vadd.f32 %v972, %v973
        %v975 = vrot.slane %v974, 1
        %v976 = vadd.f32 %v974, %v975
        %v977 = vrot.slane %v960, 4
        %v978 = vadd.f32 %v960, %v977
        %v979 = vrot.slane %v978, 2
        %v980 = vadd.f32 %v978, %v979
        %v981 = vrot.slane %v980, 1
        %v982 = vadd.f32 %v980, %v981
        %v983 = vrot.slane %v962, 4
        %v984 = vadd.f32 %v962, %v983
        %v985 = vrot.slane %v984, 2
        %v986 = vadd.f32 %v984, %v985
        %v987 = vrot.slane %v986, 1
        %v988 = vadd.f32 %v986, %v987
        %v989 = vrot.slane %v964, 4
        %v990 = vadd.f32 %v964, %v989
        %v991 = vrot.slane %v990, 2
        %v992 = vadd.f32 %v990, %v991
        %v993 = vrot.slane %v992, 1
        %v994 = vadd.f32 %v992, %v993
        %v995 = vadd.f32 %v970, 1e-30
        %v996 = vadd.f32 %v976, 1e-30
        %v997 = vadd.f32 %v982, 1e-30
        %v998 = vadd.f32 %v988, 1e-30
        %v999 = vadd.f32 %v994, 1e-30
        %v1000 = vrcp.pop %v995
        %v1001 = vmul.f32 1.0, %v1000
        %v1002 = vrcp.pop %v996
        %v1003 = vmul.f32 1.0, %v1002
        %v1004 = vrcp.pop %v997
        %v1005 = vmul.f32 1.0, %v1004
        %v1006 = vrcp.pop %v998
        %v1007 = vmul.f32 1.0, %v1006
        %v1008 = vrcp.pop %v999
        %v1009 = vmul.f32 1.0, %v1008
        %v1010 = vmul.f32 %v956, %v1001
        %v1011 = vmul.f32 %v958, %v1003
        %v1012 = vmul.f32 %v960, %v1005
        %v1013 = vmul.f32 %v962, %v1007
        %v1014 = vmul.f32 %v964, %v1009
        %1015 = vst [vmem:[%s144] sm:$0xff] %v1010
        %1016 = vst [vmem:[%s144 + $0x8] sm:$0xff] %v1011
        %1017 = vst [vmem:[%s144 + $0x10] sm:$0xff] %v1012
        %1018 = vst [vmem:[%s144 + $0x18] sm:$0xff] %v1013
        %1019 = vst [vmem:[%s144 + $0x20] sm:$0xff] %v1014
        %s1020 = sand.u32 %s62, 1
        %s1021 = scalar_lea.sflag [#allocation7], %s1020
        %s1022 = sand.u32 %s62, 1
        %s1023 = smul.addr %s1022, 40
        %s1024 = scalar_lea.vmem [#allocation8], %s1023
        // Predicated region
        $region29: #{tpu_custom_call.1} parent=23 // pred_check
          %p1025 = pneg %p72
        $region30: #{tpu_custom_call.1} parent=23 // pred_check_branch
          %1027 = sbr.rel (%p1025) target = $region32
        $region31: #{tpu_custom_call.1} parent=23 // pred_region
          %s1028 = smul.u32 5, %s28
          %s1030 = ssub.s32 640, 640
          %1031 = vsyncadd %s1021, %s1030
          %s1032 = smul.addr %s1028, 128
          %s1033 = scalar_lea.hbm %s3, %s1032
          %s1034 = sshll.u32 %s1024, 4
          %s1035 = int_to_ptr.vmem [resolvable:$true] %s1034
          %1040 = dma.vmem_to_hbm [thread:$0]  %s1035, 640, %s1033, %s1021, 128, 128, 8
        $region32: #{tpu_custom_call.1} parent=23 // pred_fallthru
          _
      $region24: #{tpu_custom_call.1} parent=5 // pred_fallthru
        _
      %p1041 = scmp.le.s32.totalorder 2, %s23
      // Predicated region
      $region33: #{tpu_custom_call.1} parent=5 // pred_check
        %p1042 = pneg %p1041
      $region34: #{tpu_custom_call.1} parent=5 // pred_check_branch
        %1044 = sbr.rel (%p1042) target = $region36
      $region35: #{tpu_custom_call.1} parent=5 // pred_region
        %s1045 = ssub.s32 %s23, 2
        // Predicated region
        $region37: #{tpu_custom_call.1} parent=35 // pred_check
          %p1046 = pneg %p78
        $region38: #{tpu_custom_call.1} parent=35 // pred_check_branch
          %1048 = sbr.rel (%p1046) target = $region40
        $region39: #{tpu_custom_call.1} parent=35 // pred_region
          %s1049 = sand.u32 %s63, 1
          %s1050 = scalar_lea.sflag [#allocation7], %s1049
          %s1051 = sand.u32 %s63, 1
          %s1052 = smul.addr %s1051, 40
          %s1053 = scalar_lea.vmem [#allocation8], %s1052
          %1054 = dma.done %s1050, 640
        $region40: #{tpu_custom_call.1} parent=35 // pred_fallthru
          _
      $region36: #{tpu_custom_call.1} parent=5 // pred_fallthru
        _
    $region6: #{tpu_custom_call.1} parent=1 // loop_footer
      %s27 = sadd.s32 1, %s23
    $region7: #{tpu_custom_call.1} parent=1 // loop_footer_branch
      %22 = sbr.rel target = $region3
    $region8: #{tpu_custom_call.1} parent=1 // loop_exit
      _
    %1055 = vsyncpa [#allocation6], 1
    %s1056 = scalar_lea.sflag [#allocation6], 1
    %1057 = vsyncpa %s1056, 1
    %1058 = vsyncpa [#allocation7], 1
    %s1059 = scalar_lea.sflag [#allocation7], 1
    %1060 = vsyncpa %s1059, 1

</llo_original>
